<compile_context>
chip_gen: v7x
topology: tpu7x:2x2x1
jax: 0.10.0
libtpu: 0.0.40
codegen_flags: <defaults>
</compile_context>

<pallas_src>
import jax
import jax.numpy as jnp
from jax.experimental import pallas as pl
from jax.experimental.pallas import tpu as pltpu

DIM_INPUT = 83
DIM_HID = 25
DIM_LATENT = 10

# only split a single-step grid into two steps (for v7x's 2 TensorCores) when the batch
# is big enough that the extra ~0.35us step overhead is negligible.
_SPLIT_MIN_ROWS = 512


def _round_up(a, b):
    return ((a + b - 1) // b) * b


def ae_kernel(x_ref,
              w1_ref, b1_ref,     # (83, 25), (1, 25)   encoder L1
              w23_ref, b23_ref,   # (25, 25), (1, 25)   fused enc L2 @ dec L1
              w4_ref, b4_ref,     # (25, 83), (1, 83)   decoder L2
              o_ref):             # (tm, 83)
    x = x_ref[...]                # (tm, 83), I/O dtype
    cdt = w1_ref.dtype            # MXU operand dtype (f32 or bf16)

    # encoder L1 + SiLU (f32 accumulation on MXU, f32 SiLU on VPU/EUP)
    h = jnp.dot(x.astype(cdt), w1_ref[...],
                preferred_element_type=jnp.float32) + b1_ref[...]
    h = h * jax.nn.sigmoid(h)

    # fused (enc L2 . dec L1): no nonlinearity between them in the original net
    g = jnp.dot(h.astype(cdt), w23_ref[...],
                preferred_element_type=jnp.float32) + b23_ref[...]
    g = g * jax.nn.sigmoid(g)

    # decoder L2
    y = jnp.dot(g.astype(cdt), w4_ref[...],
                preferred_element_type=jnp.float32) + b4_ref[...]

    o_ref[...] = y.astype(o_ref.dtype)


def prepare_params(params, compute_dtype=None):
    """Fuse the two linear-only layers; optionally cast weights to a bf16 MXU dtype.

    params: (w1, b1, w2, b2, w3, b3, w4, b4) with weights stored (in, out)
            (i.e. PyTorch W.T) and biases (1, out).
    compute_dtype: None -> keep f32 operands (exact parity);
                   jnp.bfloat16 -> recommended for v5e/v6e (halves operand bytes,
                   keeps f32 accumulation / f32 biases / f32 SiLU).
    """
    w1, b1, w2, b2, w3, b3, w4, b4 = params

    # exact algebraic fusion through the 10-dim latent (no activation in between)
    w23 = w2 @ w3                  # (25, 25)
    b23 = b2 @ w3 + b3             # (1, 25)

    if compute_dtype is not None:
        w1, w23, w4 = (w.astype(compute_dtype) for w in (w1, w23, w4))
    b1, b23, b4 = (b.astype(jnp.float32) for b in (b1, b23, b4))
    return (w1, b1, w23, b23, w4, b4)


def autoencoder_forward(x, prepared_params, *, tm=2048):
    """x: any shape reshapable to (-1, 83) (matches x.view(-1, 83) in the module)."""
    w1, b1, w23, b23, w4, b4 = prepared_params
    x2d = x.reshape(-1, DIM_INPUT)
    n = x2d.shape[0]

    # sublane multiple for the batch tile (bf16 activations pack 16 rows / vreg)
    sub = 16 if x2d.dtype == jnp.bfloat16 else 8

    # batch tile: large by default, shrink for tiny batches...
    tm_eff = min(tm, _round_up(n, sub))
    # ...and guarantee >=2 grid steps for big batches so both v7x TCs get work.
    if n >= 2 * _SPLIT_MIN_ROWS and pl.cdiv(n, tm_eff) < 2:
        tm_eff = _round_up(pl.cdiv(n, 2), sub)

    grid = pl.cdiv(n, tm_eff)   # last tile may be partial; Pallas masks the boundary

    full = lambda a: pl.BlockSpec(a.shape, lambda i: (0, 0))

    itemsize = x2d.dtype.itemsize
    cost = pl.CostEstimate(
        flops=2 * n * (DIM_INPUT * DIM_HID + DIM_HID * DIM_HID + DIM_HID * DIM_INPUT),
        transcendentals=2 * n * DIM_HID,
        bytes_accessed=2 * n * DIM_INPUT * itemsize
        + sum(int(p.size) * p.dtype.itemsize for p in prepared_params),
    )

    out = pl.pallas_call(
        ae_kernel,
        out_shape=jax.ShapeDtypeStruct((n, DIM_INPUT), x2d.dtype),
        grid_spec=pltpu.PrefetchScalarGridSpec(
            num_scalar_prefetch=0,
            grid=(grid,),
            in_specs=[
                pl.BlockSpec((tm_eff, DIM_INPUT), lambda i: (i, 0)),  # x tile (83-wide)
                full(w1), full(b1),
                full(w23), full(b23),
                full(w4), full(b4),
            ],
            out_specs=pl.BlockSpec((tm_eff, DIM_INPUT), lambda i: (i, 0)),
        ),
        compiler_params=pltpu.CompilerParams(
            dimension_semantics=("parallel",)),
        cost_estimate=cost,
    )(x2d, w1, b1, w23, b23, w4, b4)

    return out


def init_params(key, dtype=jnp.float32):
    """Deterministic synthetic init; weights stored (in, out), biases (1, out)."""
    ks = jax.random.split(key, 8)

    def lin(kw, kb, din, dout):
        bound = 1.0 / jnp.sqrt(din)
        w = jax.random.uniform(kw, (din, dout), dtype, -bound, bound)
        b = jax.random.uniform(kb, (1, dout), dtype, -bound, bound)
        return w, b

    w1, b1 = lin(ks[0], ks[1], DIM_INPUT, DIM_HID)
    w2, b2 = lin(ks[2], ks[3], DIM_HID, DIM_LATENT)
    w3, b3 = lin(ks[4], ks[5], DIM_LATENT, DIM_HID)
    w4, b4 = lin(ks[6], ks[7], DIM_HID, DIM_INPUT)
    return (w1, b1, w2, b2, w3, b3, w4, b4)


def reference_forward(x, params):
    w1, b1, w2, b2, w3, b3, w4, b4 = params
    x2d = x.reshape(-1, DIM_INPUT)
    h = jax.nn.silu(x2d @ w1 + b1)
    z = h @ w2 + b2
    g = jax.nn.silu(z @ w3 + b3)
    return g @ w4 + b4


if __name__ == "__main__":
    key = jax.random.PRNGKey(0)
    kp, kx = jax.random.split(key)
    params = init_params(kp)

    # small input; forward does x.view(-1, 83), so any leading shape works
    x = jax.random.normal(kx, (2, 8, DIM_INPUT), dtype=jnp.float32)  # -> (16, 83)
    ref = reference_forward(x, params)

    # 1) exact f32-operand path (default)
    out = autoencoder_forward(x, prepare_params(params))
    out = jax.block_until_ready(out)
    assert out.shape == (16, DIM_INPUT)
    assert jnp.allclose(out, ref, atol=1e-4, rtol=1e-4), "f32 kernel mismatch vs reference"

    # 2) bf16-operand path (recommended for v5e/v6e HBM/MXU-bound regimes);
    #    f32 accumulation + f32 SiLU, so only operand-rounding error vs. the f32 ref.
    out_bf16 = autoencoder_forward(x, prepare_params(params, compute_dtype=jnp.bfloat16))
    out_bf16 = jax.block_until_ready(out_bf16)
    assert jnp.allclose(out_bf16, ref, atol=2e-2, rtol=2e-2), "bf16 kernel mismatch vs reference"

    print("KERNEL_OK")
</pallas_src>

<mosaic_0001>
module attributes {stable_mosaic.version = 11 : i64} {
  func.func @ae_kernel(%arg0: i32, %arg1: memref<16x83xf32, #tpu.memory_space<vmem>>, %arg2: memref<83x25xf32, #tpu.memory_space<vmem>>, %arg3: memref<1x25xf32, #tpu.memory_space<vmem>>, %arg4: memref<25x25xf32, #tpu.memory_space<vmem>>, %arg5: memref<1x25xf32, #tpu.memory_space<vmem>>, %arg6: memref<25x83xf32, #tpu.memory_space<vmem>>, %arg7: memref<1x83xf32, #tpu.memory_space<vmem>>, %arg8: memref<16x83xf32, #tpu.memory_space<vmem>>) attributes {dimension_semantics = [#tpu.dimension_semantics<parallel>], iteration_bounds = array<i64: 1>, scalar_prefetch = 0 : i64, scratch_operands = 0 : i64, tpu.core_type = #tpu.core_type<tc>, window_params = [{transform_indices = @transform_0, window_bounds = array<i64: 16, 83>}, {pipeline_mode = #tpu.pipeline_mode<synchronous>, transform_indices = @transform_1, window_bounds = array<i64: 83, 25>}, {pipeline_mode = #tpu.pipeline_mode<synchronous>, transform_indices = @transform_2, window_bounds = array<i64: 1, 25>}, {pipeline_mode = #tpu.pipeline_mode<synchronous>, transform_indices = @transform_3, window_bounds = array<i64: 25, 25>}, {pipeline_mode = #tpu.pipeline_mode<synchronous>, transform_indices = @transform_4, window_bounds = array<i64: 1, 25>}, {pipeline_mode = #tpu.pipeline_mode<synchronous>, transform_indices = @transform_5, window_bounds = array<i64: 25, 83>}, {pipeline_mode = #tpu.pipeline_mode<synchronous>, transform_indices = @transform_6, window_bounds = array<i64: 1, 83>}, {transform_indices = @transform_7, window_bounds = array<i64: 16, 83>}]} {
    %c0 = arith.constant 0 : index
    %c0_0 = arith.constant 0 : index
    %0 = vector.load %arg1[%c0, %c0_0] : memref<16x83xf32, #tpu.memory_space<vmem>>, vector<16x83xf32>
    %c0_1 = arith.constant 0 : index
    %c0_2 = arith.constant 0 : index
    %1 = vector.load %arg2[%c0_1, %c0_2] : memref<83x25xf32, #tpu.memory_space<vmem>>, vector<83x25xf32>
    %cst = arith.constant dense<0.000000e+00> : vector<16x25xf32>
    %2 = tpu.matmul %0, %1, %cst {dimension_numbers = #tpu.dot_dimension_numbers<[1], [0], [0], [1], [0, 0, 1, 1], [], []>} : vector<16x83xf32>, vector<83x25xf32>, vector<16x25xf32> -> vector<16x25xf32>
    %c0_3 = arith.constant 0 : index
    %c0_4 = arith.constant 0 : index
    %3 = vector.load %arg3[%c0_3, %c0_4] : memref<1x25xf32, #tpu.memory_space<vmem>>, vector<1x25xf32>
    %4 = vector.broadcast %3 : vector<1x25xf32> to vector<16x25xf32>
    %5 = arith.addf %2, %4 : vector<16x25xf32>
    %6 = arith.negf %5 : vector<16x25xf32>
    %7 = math.exp %6 : vector<16x25xf32>
    %cst_5 = arith.constant 1.000000e+00 : f32
    %8 = vector.broadcast %cst_5 : f32 to vector<16x25xf32>
    %9 = arith.addf %8, %7 : vector<16x25xf32>
    %10 = arith.divf %8, %9 : vector<16x25xf32>
    %11 = arith.mulf %5, %10 : vector<16x25xf32>
    %c0_6 = arith.constant 0 : index
    %c0_7 = arith.constant 0 : index
    %12 = vector.load %arg4[%c0_6, %c0_7] : memref<25x25xf32, #tpu.memory_space<vmem>>, vector<25x25xf32>
    %cst_8 = arith.constant dense<0.000000e+00> : vector<16x25xf32>
    %13 = tpu.matmul %11, %12, %cst_8 {dimension_numbers = #tpu.dot_dimension_numbers<[1], [0], [0], [1], [0, 0, 1, 1], [], []>} : vector<16x25xf32>, vector<25x25xf32>, vector<16x25xf32> -> vector<16x25xf32>
    %c0_9 = arith.constant 0 : index
    %c0_10 = arith.constant 0 : index
    %14 = vector.load %arg5[%c0_9, %c0_10] : memref<1x25xf32, #tpu.memory_space<vmem>>, vector<1x25xf32>
    %15 = vector.broadcast %14 : vector<1x25xf32> to vector<16x25xf32>
    %16 = arith.addf %13, %15 : vector<16x25xf32>
    %17 = arith.negf %16 : vector<16x25xf32>
    %18 = math.exp %17 : vector<16x25xf32>
    %cst_11 = arith.constant 1.000000e+00 : f32
    %19 = vector.broadcast %cst_11 : f32 to vector<16x25xf32>
    %20 = arith.addf %19, %18 : vector<16x25xf32>
    %21 = arith.divf %19, %20 : vector<16x25xf32>
    %22 = arith.mulf %16, %21 : vector<16x25xf32>
    %c0_12 = arith.constant 0 : index
    %c0_13 = arith.constant 0 : index
    %23 = vector.load %arg6[%c0_12, %c0_13] : memref<25x83xf32, #tpu.memory_space<vmem>>, vector<25x83xf32>
    %cst_14 = arith.constant dense<0.000000e+00> : vector<16x83xf32>
    %24 = tpu.matmul %22, %23, %cst_14 {dimension_numbers = #tpu.dot_dimension_numbers<[1], [0], [0], [1], [0, 0, 1, 1], [], []>} : vector<16x25xf32>, vector<25x83xf32>, vector<16x83xf32> -> vector<16x83xf32>
    %c0_15 = arith.constant 0 : index
    %c0_16 = arith.constant 0 : index
    %25 = vector.load %arg7[%c0_15, %c0_16] : memref<1x83xf32, #tpu.memory_space<vmem>>, vector<1x83xf32>
    %26 = vector.broadcast %25 : vector<1x83xf32> to vector<16x83xf32>
    %27 = arith.addf %24, %26 : vector<16x83xf32>
    %c0_17 = arith.constant 0 : index
    %c0_18 = arith.constant 0 : index
    %28 = vector.load %arg8[%c0_17, %c0_18] : memref<16x83xf32, #tpu.memory_space<vmem>>, vector<16x83xf32>
    tpu.vector_store %arg8[%c0_17, %c0_18], %27 {strides = array<i32>} : memref<16x83xf32, #tpu.memory_space<vmem>>, vector<16x83xf32>,
    return
  }
  func.func @transform_0(%arg0: i32) -> (i32, i32) {
    %c0_i32 = arith.constant 0 : i32
    %c0_i32_0 = arith.constant 0 : i32
    return %arg0, %c0_i32 : i32, i32
  }
  func.func @transform_1(%arg0: i32) -> (i32, i32) {
    %c0_i32 = arith.constant 0 : i32
    %c0_i32_0 = arith.constant 0 : i32
    %c0_i32_1 = arith.constant 0 : i32
    return %c0_i32, %c0_i32_0 : i32, i32
  }
  func.func @transform_2(%arg0: i32) -> (i32, i32) {
    %c0_i32 = arith.constant 0 : i32
    %c0_i32_0 = arith.constant 0 : i32
    %c0_i32_1 = arith.constant 0 : i32
    return %c0_i32, %c0_i32_0 : i32, i32
  }
  func.func @transform_3(%arg0: i32) -> (i32, i32) {
    %c0_i32 = arith.constant 0 : i32
    %c0_i32_0 = arith.constant 0 : i32
    %c0_i32_1 = arith.constant 0 : i32
    return %c0_i32, %c0_i32_0 : i32, i32
  }
  func.func @transform_4(%arg0: i32) -> (i32, i32) {
    %c0_i32 = arith.constant 0 : i32
    %c0_i32_0 = arith.constant 0 : i32
    %c0_i32_1 = arith.constant 0 : i32
    return %c0_i32, %c0_i32_0 : i32, i32
  }
  func.func @transform_5(%arg0: i32) -> (i32, i32) {
    %c0_i32 = arith.constant 0 : i32
    %c0_i32_0 = arith.constant 0 : i32
    %c0_i32_1 = arith.constant 0 : i32
    return %c0_i32, %c0_i32_0 : i32, i32
  }
  func.func @transform_6(%arg0: i32) -> (i32, i32) {
    %c0_i32 = arith.constant 0 : i32
    %c0_i32_0 = arith.constant 0 : i32
    %c0_i32_1 = arith.constant 0 : i32
    return %c0_i32, %c0_i32_0 : i32, i32
  }
  func.func @transform_7(%arg0: i32) -> (i32, i32) {
    %c0_i32 = arith.constant 0 : i32
    %c0_i32_0 = arith.constant 0 : i32
    return %arg0, %c0_i32 : i32, i32
  }
}

</mosaic_0001>

<llo_original>
// kernel: tpu_custom_call.1
$region0: #{tpu_custom_call.1}
  #allocation0 [shape = 'u32[]', space=smem, size = 0x4, offset = 0x4, fixed_abs, tag = 'smem constant byte address 0x4 - core index']
  #allocation1 [shape = 'u32[144,128]{1,0:T(1,128)}', space=vmem, size = 0x12000, scoped, tag = 'internal scratch']
  %s0 = inlined_call_operand.vmem [shape: f32[16,83], index: 0, kind: input, shape index: {}]
  %s1 = inlined_call_operand.vmem [shape: f32[83,25], index: 1, kind: input, shape index: {}]
  %s2 = inlined_call_operand.vmem [shape: f32[1,25], index: 2, kind: input, shape index: {}]
  %s3 = inlined_call_operand.vmem [shape: f32[25,25], index: 3, kind: input, shape index: {}]
  %s4 = inlined_call_operand.vmem [shape: f32[1,25], index: 4, kind: input, shape index: {}]
  %s5 = inlined_call_operand.vmem [shape: f32[25,83], index: 5, kind: input, shape index: {}]
  %s6 = inlined_call_operand.vmem [shape: f32[1,83], index: 6, kind: input, shape index: {}]
  %s7 = inlined_call_operand.hbm [shape: f32[16,83], index: 7, kind: output, shape index: {}]
  %s8 = sld [smem:[#allocation0]]
  $region38: #{tpu_custom_call.1} parent=0
    _
  %s10 = ssub.s32 1, %s8
  %s11 = scalar_select 0, %s10, %s8
  $region1: #{tpu_custom_call.1} parent=0
    #allocation2 [shape = 'u8[8192]{0}', space=vmem, size = 0x2000, scoped, tag = 'output window, operand 0, single buffered']
    #allocation3 [shape = 's32[1]{0}', space=sflag, size = 0x4, scoped, tag = 'scoped memory for tpu_custom_call.1']
    %12 = vsyncpa [#allocation3], 0
    // Predicated region
    $region2: #{tpu_custom_call.1} parent=1 // pred_check
      _
    $region3: #{tpu_custom_call.1} parent=1 // pred_check_branch
      %14 = sbr.rel (0) target = $region5
    $region4: #{tpu_custom_call.1} parent=1 // pred_region
      _
    $region5: #{tpu_custom_call.1} parent=1 // pred_fallthru
      _
    // Predicated region
    $region6: #{tpu_custom_call.1} parent=1 // pred_check
      _
    $region7: #{tpu_custom_call.1} parent=1 // pred_check_branch
      %16 = sbr.rel (0) target = $region9
    $region8: #{tpu_custom_call.1} parent=1 // pred_region
      _
    $region9: #{tpu_custom_call.1} parent=1 // pred_fallthru
      _
    // Predicated region
    $region10: #{tpu_custom_call.1} parent=1 // pred_check
      _
    $region11: #{tpu_custom_call.1} parent=1 // pred_check_branch
      %18 = sbr.rel (0) target = $region13
    $region12: #{tpu_custom_call.1} parent=1 // pred_region
      _
    $region13: #{tpu_custom_call.1} parent=1 // pred_fallthru
      _
    // Predicated region
    $region14: #{tpu_custom_call.1} parent=1 // pred_check
      _
    $region15: #{tpu_custom_call.1} parent=1 // pred_check_branch
      %20 = sbr.rel (0) target = $region17
    $region16: #{tpu_custom_call.1} parent=1 // pred_region
      _
    $region17: #{tpu_custom_call.1} parent=1 // pred_fallthru
      _
    // Predicated region
    $region18: #{tpu_custom_call.1} parent=1 // pred_check
      _
    $region19: #{tpu_custom_call.1} parent=1 // pred_check_branch
      %22 = sbr.rel (0) target = $region21
    $region20: #{tpu_custom_call.1} parent=1 // pred_region
      _
    $region21: #{tpu_custom_call.1} parent=1 // pred_fallthru
      _
    // Predicated region
    $region22: #{tpu_custom_call.1} parent=1 // pred_check
      _
    $region23: #{tpu_custom_call.1} parent=1 // pred_check_branch
      %24 = sbr.rel (0) target = $region25
    $region24: #{tpu_custom_call.1} parent=1 // pred_region
      _
    $region25: #{tpu_custom_call.1} parent=1 // pred_fallthru
      _
    // Predicated region
    $region26: #{tpu_custom_call.1} parent=1 // pred_check
      _
    $region27: #{tpu_custom_call.1} parent=1 // pred_check_branch
      %26 = sbr.rel (0) target = $region29
    $region28: #{tpu_custom_call.1} parent=1 // pred_region
      _
    $region29: #{tpu_custom_call.1} parent=1 // pred_fallthru
      _
    %v27 = vld [vmem:[%s0] sm:$0xff]
    %v28 = vld [vmem:[%s0 + $0x8] sm:$0xff]
    %v29 = vld [vmem:[%s1] sm:$0xff]
    %v30 = vld [vmem:[%s1 + $0x8] sm:$0xff]
    %v31 = vld [vmem:[%s1 + $0x10] sm:$0xff]
    %v32 = vld [vmem:[%s1 + $0x18] sm:$0xff]
    %v33 = vld [vmem:[%s1 + $0x20] sm:$0xff]
    %v34 = vld [vmem:[%s1 + $0x28] sm:$0xff]
    %v35 = vld [vmem:[%s1 + $0x30] sm:$0xff]
    %v36 = vld [vmem:[%s1 + $0x38] sm:$0xff]
    %v37 = vld [vmem:[%s1 + $0x40] sm:$0xff]
    %v38 = vld [vmem:[%s1 + $0x48] sm:$0xff]
    %v39 = vld [vmem:[%s1 + $0x50] sm:$0x7]
    %v40 = vld [vmem:[%s2] sm:$0x1]
    %v42 = vlaneseq
    %v43 = vshrl.u32 %v42, 7
    %v44 = vsub.s32 0, %v43
    %v45 = vrot.slane %v40, %v44
    %vm47 = vcmask 678912
    %v49 = vsel %vm47, %v27, 0
    %v52 = vsel %vm47, %v28, 0
    %vm54 = vcmask 1042432
    %v56 = vsel %vm54, %v39, 0
    %58 = vmatprep.subr.mxu0 0.0
    %59 = vmatpush1.msra.mxu0 %v29
    %60 = vmatprep.subr.mxu0 0.0
    %61 = vmatpush1.msra.mxu0 %v30
    %62 = vmatprep.subr.mxu0 0.0
    %63 = vmatpush1.msra.mxu0 %v31
    %64 = vmatprep.subr.mxu0 0.0
    %65 = vmatpush1.msra.mxu0 %v32
    %66 = vmatprep.subr.mxu0 0.0
    %67 = vmatpush1.msra.mxu0 %v33
    %68 = vmatprep.subr.mxu0 0.0
    %69 = vmatpush1.msra.mxu0 %v34
    %70 = vmatprep.subr.mxu0 0.0
    %71 = vmatpush1.msra.mxu0 %v35
    %72 = vmatprep.subr.mxu0 0.0
    %73 = vmatpush1.msra.mxu0 %v36
    %74 = vmatprep.subr.mxu0 0.0
    %75 = vmatpush1.msra.mxu0 %v37
    %76 = vmatprep.subr.mxu0 0.0
    %77 = vmatpush1.msra.mxu0 %v38
    %78 = vmatprep.subr.mxu0 0.0
    %79 = vmatpush1.msra.mxu0 %v56
    %80 = vmatprep.subr.mxu0 0.0
    %81 = vmatpush1.msra.mxu0 0.0
    %82 = vmatprep.subr.mxu0 0.0
    %83 = vmatpush1.msra.mxu0 0.0
    %84 = vmatprep.subr.mxu0 0.0
    %85 = vmatpush1.msra.mxu0 0.0
    %86 = vmatprep.subr.mxu0 0.0
    %87 = vmatpush1.msra.mxu0 0.0
    %88 = vmatprep.subr.mxu0 0.0
    %89 = vmatpush1.msra.mxu0 0.0
    %90 = vmatprep.subr.mxu0 0.0
    %91 = vmatpush1.msra.mxu0 0.0
    %92 = vmatprep.subr.mxu0 0.0
    %93 = vmatpush1.msra.mxu0 0.0
    %94 = vmatprep.subr.mxu0 0.0
    %95 = vmatpush1.msra.mxu0 0.0
    %96 = vmatprep.subr.mxu0 0.0
    %97 = vmatpush1.msra.mxu0 0.0
    %98 = vmatprep.subr.mxu0 0.0
    %99 = vmatpush1.msra.mxu0 0.0
    %100 = vmatprep.subr.mxu0 0.0
    %101 = vmatpush1.msra.mxu0 0.0
    %102 = vmatprep.subr.mxu0 0.0
    %103 = vmatpush1.msra.mxu0 0.0
    %104 = vmatprep.subr.mxu0 0.0
    %105 = vmatpush1.msra.mxu0 0.0
    %106 = vmatprep.subr.mxu0 0.0
    %107 = vmatpush1.msra.mxu0 0.0
    %108 = vmatprep.subr.mxu0 0.0
    %109 = vmatpush1.msra.mxu0 0.0
    %110 = vmatprep.subr.mxu0 0.0
    %111 = vmatpush1.msra.mxu0 0.0
    %112 = vmatprep.subr.mxu0 0.0
    %113 = vmatpush1.msra.mxu0 0.0
    %114 = vmatprep.subr.mxu0 0.0
    %115 = vmatpush1.msra.mxu0 0.0
    %116 = vmatprep.subr.mxu0 0.0
    %117 = vmatpush1.msra.mxu0 0.0
    %118 = vmatprep.subr.mxu0 0.0
    %119 = vmatpush1.msra.mxu0 0.0
    %120 = vmatprep.subr.mxu0 0.0
    %121 = vmatpush1.msra.mxu0 0.0
    %122 = vmatprep.mubr.f32.mxu0 0.0
    %123 = vmatmul.mubr.f32.gmra.mrb[0].mxu0 %v49
    %v124 = vpop.f32.mrb[0].mxu0
    %v125 = vadd.f32 %v45, %v124
    %v126 = vpop.f32.mrb[0].mxu0
    %127 = vmatprep.mubr.f32.mxu0 0.0
    %128 = vmatmul.mubr.f32.gmra.mrb[0].mxu0 %v52
    %v129 = vpop.f32.mrb[0].mxu0
    %v130 = vadd.f32 %v45, %v129
    %v131 = vpop.f32.mrb[0].mxu0
    %132 = vdwg.mxu0
    %v133 = vxor.u32 %v125, 2147483648
    %v134 = vxor.u32 %v130, 2147483648
    %v135 = vmul.f32 %v133, 1.442695
    %v136 = vpow.pop %v135
    %v137 = vmul.f32 %v134, 1.442695
    %v138 = vpow.pop %v137
    %v139 = vadd.f32 %v136, 1.0
    %v140 = vadd.f32 %v138, 1.0
    %v141 = vrcp.pop %v139
    %v142 = vmul.f32 1.0, %v141
    %v143 = vrcp.pop %v140
    %v144 = vmul.f32 1.0, %v143
    %v145 = vmul.f32 %v125, %v142
    %v146 = vmul.f32 %v130, %v144
    %v147 = vld [vmem:[%s3] sm:$0xff]
    %v148 = vld [vmem:[%s3 + $0x8] sm:$0xff]
    %v149 = vld [vmem:[%s3 + $0x10] sm:$0xff]
    %v150 = vld [vmem:[%s3 + $0x18] sm:$0x1]
    %v151 = vld [vmem:[%s4] sm:$0x1]
    %v153 = vlaneseq
    %v154 = vshrl.u32 %v153, 7
    %v155 = vsub.s32 0, %v154
    %v156 = vrot.slane %v151, %v155
    %vm158 = vcmask 203776
    %v160 = vsel %vm158, %v145, 0
    %v163 = vsel %vm158, %v146, 0
    %vm165 = vcmask 1040384
    %v167 = vsel %vm165, %v150, 0
    %169 = vmatprep.subr.mxu0 0.0
    %170 = vmatpush1.msra.mxu0 %v147
    %171 = vmatprep.subr.mxu0 0.0
    %172 = vmatpush1.msra.mxu0 %v148
    %173 = vmatprep.subr.mxu0 0.0
    %174 = vmatpush1.msra.mxu0 %v149
    %175 = vmatprep.subr.mxu0 0.0
    %176 = vmatpush1.msra.mxu0 %v167
    %177 = vmatprep.subr.mxu0 0.0
    %178 = vmatpush1.msra.mxu0 0.0
    %179 = vmatprep.subr.mxu0 0.0
    %180 = vmatpush1.msra.mxu0 0.0
    %181 = vmatprep.subr.mxu0 0.0
    %182 = vmatpush1.msra.mxu0 0.0
    %183 = vmatprep.subr.mxu0 0.0
    %184 = vmatpush1.msra.mxu0 0.0
    %185 = vmatprep.subr.mxu0 0.0
    %186 = vmatpush1.msra.mxu0 0.0
    %187 = vmatprep.subr.mxu0 0.0
    %188 = vmatpush1.msra.mxu0 0.0
    %189 = vmatprep.subr.mxu0 0.0
    %190 = vmatpush1.msra.mxu0 0.0
    %191 = vmatprep.subr.mxu0 0.0
    %192 = vmatpush1.msra.mxu0 0.0
    %193 = vmatprep.subr.mxu0 0.0
    %194 = vmatpush1.msra.mxu0 0.0
    %195 = vmatprep.subr.mxu0 0.0
    %196 = vmatpush1.msra.mxu0 0.0
    %197 = vmatprep.subr.mxu0 0.0
    %198 = vmatpush1.msra.mxu0 0.0
    %199 = vmatprep.subr.mxu0 0.0
    %200 = vmatpush1.msra.mxu0 0.0
    %201 = vmatprep.subr.mxu0 0.0
    %202 = vmatpush1.msra.mxu0 0.0
    %203 = vmatprep.subr.mxu0 0.0
    %204 = vmatpush1.msra.mxu0 0.0
    %205 = vmatprep.subr.mxu0 0.0
    %206 = vmatpush1.msra.mxu0 0.0
    %207 = vmatprep.subr.mxu0 0.0
    %208 = vmatpush1.msra.mxu0 0.0
    %209 = vmatprep.subr.mxu0 0.0
    %210 = vmatpush1.msra.mxu0 0.0
    %211 = vmatprep.subr.mxu0 0.0
    %212 = vmatpush1.msra.mxu0 0.0
    %213 = vmatprep.subr.mxu0 0.0
    %214 = vmatpush1.msra.mxu0 0.0
    %215 = vmatprep.subr.mxu0 0.0
    %216 = vmatpush1.msra.mxu0 0.0
    %217 = vmatprep.subr.mxu0 0.0
    %218 = vmatpush1.msra.mxu0 0.0
    %219 = vmatprep.subr.mxu0 0.0
    %220 = vmatpush1.msra.mxu0 0.0
    %221 = vmatprep.subr.mxu0 0.0
    %222 = vmatpush1.msra.mxu0 0.0
    %223 = vmatprep.subr.mxu0 0.0
    %224 = vmatpush1.msra.mxu0 0.0
    %225 = vmatprep.subr.mxu0 0.0
    %226 = vmatpush1.msra.mxu0 0.0
    %227 = vmatprep.subr.mxu0 0.0
    %228 = vmatpush1.msra.mxu0 0.0
    %229 = vmatprep.subr.mxu0 0.0
    %230 = vmatpush1.msra.mxu0 0.0
    %231 = vmatprep.subr.mxu0 0.0
    %232 = vmatpush1.msra.mxu0 0.0
    %233 = vmatprep.mubr.f32.mxu0 0.0
    %234 = vmatmul.mubr.f32.gmra.mrb[0].mxu0 %v160
    %v235 = vpop.f32.mrb[0].mxu0
    %v236 = vadd.f32 %v156, %v235
    %v237 = vpop.f32.mrb[0].mxu0
    %238 = vmatprep.mubr.f32.mxu0 0.0
    %239 = vmatmul.mubr.f32.gmra.mrb[0].mxu0 %v163
    %v240 = vpop.f32.mrb[0].mxu0
    %v241 = vadd.f32 %v156, %v240
    %v242 = vpop.f32.mrb[0].mxu0
    %243 = vdwg.mxu0
    %v244 = vxor.u32 %v236, 2147483648
    %v245 = vxor.u32 %v241, 2147483648
    %v246 = vmul.f32 %v244, 1.442695
    %v247 = vpow.pop %v246
    %v248 = vmul.f32 %v245, 1.442695
    %v249 = vpow.pop %v248
    %v250 = vadd.f32 %v247, 1.0
    %v251 = vadd.f32 %v249, 1.0
    %v252 = vrcp.pop %v250
    %v253 = vmul.f32 1.0, %v252
    %v254 = vrcp.pop %v251
    %v255 = vmul.f32 1.0, %v254
    %v256 = vmul.f32 %v236, %v253
    %v257 = vmul.f32 %v241, %v255
    %v258 = vld [vmem:[%s5] sm:$0xff]
    %v259 = vld [vmem:[%s5 + $0x8] sm:$0xff]
    %v260 = vld [vmem:[%s5 + $0x10] sm:$0xff]
    %v261 = vld [vmem:[%s5 + $0x18] sm:$0x1]
    %v262 = vld [vmem:[%s6] sm:$0x1]
    %v264 = vlaneseq
    %v265 = vshrl.u32 %v264, 7
    %v266 = vsub.s32 0, %v265
    %v267 = vrot.slane %v262, %v266
    %v270 = vsel %vm158, %v256, 0
    %v273 = vsel %vm158, %v257, 0
    %v276 = vsel %vm165, %v261, 0
    %278 = vmatprep.subr.mxu0 0.0
    %279 = vmatpush1.msra.mxu0 %v258
    %280 = vmatprep.subr.mxu0 0.0
    %281 = vmatpush1.msra.mxu0 %v259
    %282 = vmatprep.subr.mxu0 0.0
    %283 = vmatpush1.msra.mxu0 %v260
    %284 = vmatprep.subr.mxu0 0.0
    %285 = vmatpush1.msra.mxu0 %v276
    %286 = vmatprep.subr.mxu0 0.0
    %287 = vmatpush1.msra.mxu0 0.0
    %288 = vmatprep.subr.mxu0 0.0
    %289 = vmatpush1.msra.mxu0 0.0
    %290 = vmatprep.subr.mxu0 0.0
    %291 = vmatpush1.msra.mxu0 0.0
    %292 = vmatprep.subr.mxu0 0.0
    %293 = vmatpush1.msra.mxu0 0.0
    %294 = vmatprep.subr.mxu0 0.0
    %295 = vmatpush1.msra.mxu0 0.0
    %296 = vmatprep.subr.mxu0 0.0
    %297 = vmatpush1.msra.mxu0 0.0
    %298 = vmatprep.subr.mxu0 0.0
    %299 = vmatpush1.msra.mxu0 0.0
    %300 = vmatprep.subr.mxu0 0.0
    %301 = vmatpush1.msra.mxu0 0.0
    %302 = vmatprep.subr.mxu0 0.0
    %303 = vmatpush1.msra.mxu0 0.0
    %304 = vmatprep.subr.mxu0 0.0
    %305 = vmatpush1.msra.mxu0 0.0
    %306 = vmatprep.subr.mxu0 0.0
    %307 = vmatpush1.msra.mxu0 0.0
    %308 = vmatprep.subr.mxu0 0.0
    %309 = vmatpush1.msra.mxu0 0.0
    %310 = vmatprep.subr.mxu0 0.0
    %311 = vmatpush1.msra.mxu0 0.0
    %312 = vmatprep.subr.mxu0 0.0
    %313 = vmatpush1.msra.mxu0 0.0
    %314 = vmatprep.subr.mxu0 0.0
    %315 = vmatpush1.msra.mxu0 0.0
    %316 = vmatprep.subr.mxu0 0.0
    %317 = vmatpush1.msra.mxu0 0.0
    %318 = vmatprep.subr.mxu0 0.0
    %319 = vmatpush1.msra.mxu0 0.0
    %320 = vmatprep.subr.mxu0 0.0
    %321 = vmatpush1.msra.mxu0 0.0
    %322 = vmatprep.subr.mxu0 0.0
    %323 = vmatpush1.msra.mxu0 0.0
    %324 = vmatprep.subr.mxu0 0.0
    %325 = vmatpush1.msra.mxu0 0.0
    %326 = vmatprep.subr.mxu0 0.0
    %327 = vmatpush1.msra.mxu0 0.0
    %328 = vmatprep.subr.mxu0 0.0
    %329 = vmatpush1.msra.mxu0 0.0
    %330 = vmatprep.subr.mxu0 0.0
    %331 = vmatpush1.msra.mxu0 0.0
    %332 = vmatprep.subr.mxu0 0.0
    %333 = vmatpush1.msra.mxu0 0.0
    %334 = vmatprep.subr.mxu0 0.0
    %335 = vmatpush1.msra.mxu0 0.0
    %336 = vmatprep.subr.mxu0 0.0
    %337 = vmatpush1.msra.mxu0 0.0
    %338 = vmatprep.subr.mxu0 0.0
    %339 = vmatpush1.msra.mxu0 0.0
    %340 = vmatprep.subr.mxu0 0.0
    %341 = vmatpush1.msra.mxu0 0.0
    %342 = vmatprep.mubr.f32.mxu0 0.0
    %343 = vmatmul.mubr.f32.gmra.mrb[0].mxu0 %v270
    %v344 = vpop.f32.mrb[0].mxu0
    %v345 = vadd.f32 %v267, %v344
    %v346 = vpop.f32.mrb[0].mxu0
    %347 = vmatprep.mubr.f32.mxu0 0.0
    %348 = vmatmul.mubr.f32.gmra.mrb[0].mxu0 %v273
    %v349 = vpop.f32.mrb[0].mxu0
    %v350 = vadd.f32 %v267, %v349
    %v351 = vpop.f32.mrb[0].mxu0
    %352 = vdwg.mxu0
    %353 = vst.msk [vmem:[#allocation2] sm:$0xff] %vm47, %v345
    %354 = vst.msk [vmem:[#allocation2 + $0x8] sm:$0xff] %vm47, %v350
    // Predicated region
    $region30: #{tpu_custom_call.1} parent=1 // pred_check
      _
    $region31: #{tpu_custom_call.1} parent=1 // pred_check_branch
      %356 = sbr.rel (0) target = $region33
    $region32: #{tpu_custom_call.1} parent=1 // pred_region
      %s358 = ssub.s32 256, 256
      %359 = vsyncadd [#allocation3], %s358
      %s360 = sshll.u32 [#allocation2], 4
      %s361 = int_to_ptr.vmem [resolvable:$true] %s360
      %366 = dma.vmem_to_hbm [thread:$0]  %s361, 256, %s7, [#allocation3], 128, 128, 8
    $region33: #{tpu_custom_call.1} parent=1 // pred_fallthru
      _
    // Predicated region
    $region34: #{tpu_custom_call.1} parent=1 // pred_check
      _
    $region35: #{tpu_custom_call.1} parent=1 // pred_check_branch
      %368 = sbr.rel (0) target = $region37
    $region36: #{tpu_custom_call.1} parent=1 // pred_region
      %369 = dma.done [#allocation3], 256
    $region37: #{tpu_custom_call.1} parent=1 // pred_fallthru
      _
    %370 = vsyncpa [#allocation3], 1

</llo_original>
